<compile_context>
chip_gen: v7x
topology: tpu7x:2x2x1
jax: 0.10.0
libtpu: 0.0.40
codegen_flags: <defaults>
</compile_context>

<pallas_src>
import jax
import jax.numpy as jnp
from jax.experimental import pallas as pl
from jax.experimental.pallas import tpu as pltpu


_LANES = 128      # lane width
_SUBLANES = 16    # bf16 sublane tile (also fine for the f32 output, 16 % 8 == 0)


def _round_up(x, m):
    return (x + m - 1) // m * m


def _conv_bn_relu_kernel(w_ref, a_ref, shift_ref, o_ref):
    # w_ref:     (C_sub, K_pad)  bf16  weights with BN scale pre-folded
    # a_ref:     (K_pad, tm)     bf16  im2col patches (transposed: M on lanes)
    # shift_ref: (C_sub, 1)      f32   folded conv-bias + BN shift
    # o_ref:     (C_sub, tm)     f32   Cout-major, lane-dense output tile
    acc = jnp.dot(w_ref[...], a_ref[...], preferred_element_type=jnp.float32)
    o_ref[...] = jnp.maximum(acc + shift_ref[...], 0.0).astype(o_ref.dtype)


def _pick_tm(m_128, tm_cap=2048):
    """Pick a lane-dense M tile: big (amortize ~0.35us/step), but >= 2 grid
    steps once M_pad >= 256 so the grid shards across v7x's two TensorCores."""
    if m_128 <= _LANES:
        return m_128
    half = _round_up((m_128 + 1) // 2, _LANES)
    return min(tm_cap, half)


def conv2d_bn_relu(x, weight, bias, gamma, beta, running_mean, running_var,
                   *, stride=2, padding=1, eps=1e-5, tm_cap=2048):
    """x: [N, Cin, H, W] float32 (NCHW).  Returns [N, Cout, Ho, Wo] float32."""
    N, Cin, H, W = x.shape
    Cout, _, kh, kw = weight.shape
    Ho = (H + 2 * padding - kh) // stride + 1
    Wo = (W + 2 * padding - kw) // stride + 1

    M = N * Ho * Wo
    K = Cin * kh * kw
    K_pad = _round_up(K, _LANES)
    C_sub = _round_up(Cout, _SUBLANES)

    tm = _pick_tm(_round_up(M, _LANES), tm_cap)
    M_pad = _round_up(M, tm)
    grid = (M_pad // tm,)

    # --- glue: zero-pad + im2col (pure reshuffle, no arithmetic) ------------
    xp = jnp.pad(x, ((0, 0), (0, 0), (padding, padding), (padding, padding)))
    cols = []
    for i in range(kh):
        for j in range(kw):
            cols.append(
                xp[:, :, i:i + stride * Ho:stride, j:j + stride * Wo:stride])
    patches = jnp.stack(cols, axis=0)                   # [taps, N, Cin, Ho, Wo]
    patches = jnp.transpose(patches, (2, 0, 1, 3, 4))   # [Cin, taps, N, Ho, Wo]
    # K-index ordering: cin*(kh*kw) + i*kw + j (matches weight.reshape(Cout, K))
    At = patches.reshape(K, M).astype(jnp.float32)
    At = jnp.pad(At, ((0, K_pad - K), (0, M_pad - M))).astype(jnp.bfloat16)

    # --- glue: fold eval-mode BN + conv bias into weight / shift ------------
    scale = (gamma / jnp.sqrt(running_var + eps)).astype(jnp.float32)    # [Cout]
    shift = (beta + scale * (bias - running_mean)).astype(jnp.float32)   # [Cout]
    Wm = weight.reshape(Cout, K).astype(jnp.float32) * scale[:, None]    # [Cout,K]
    Wm = jnp.pad(Wm, ((0, C_sub - Cout), (0, K_pad - K))).astype(jnp.bfloat16)
    shift2 = jnp.pad(shift.reshape(Cout, 1), ((0, C_sub - Cout), (0, 0)))

    cost = pl.CostEstimate(
        flops=2 * C_sub * K_pad * M_pad,
        transcendentals=0,
        bytes_accessed=(At.size * 2 + Wm.size * 2 + shift2.size * 4
                        + C_sub * M_pad * 4),
    )

    # Per-step VMEM: (tm*K_pad + C_sub*K_pad)*2B bf16 + C_sub*tm*4B f32, all
    # double-buffered; <= ~1.5 MiB at tm=2048 -> far under every generation's
    # scoped VMEM default, so no vmem_limit_bytes override is needed.
    out_flat = pl.pallas_call(
        _conv_bn_relu_kernel,
        out_shape=jax.ShapeDtypeStruct((C_sub, M_pad), jnp.float32),
        grid_spec=pltpu.PrefetchScalarGridSpec(
            num_scalar_prefetch=0,
            grid=grid,
            in_specs=[
                pl.BlockSpec((C_sub, K_pad), lambda i: (0, 0)),
                pl.BlockSpec((K_pad, tm), lambda i: (0, i)),
                pl.BlockSpec((C_sub, 1), lambda i: (0, 0)),
            ],
            out_specs=pl.BlockSpec((C_sub, tm), lambda i: (0, i)),
        ),
        compiler_params=pltpu.CompilerParams(
            dimension_semantics=("parallel",)),
        cost_estimate=cost,
    )(Wm, At, shift2)

    # slice off sublane / M padding, then (Cout, N*Ho*Wo) -> NCHW
    out = out_flat[:Cout, :M].reshape(Cout, N, Ho, Wo).transpose(1, 0, 2, 3)
    return out


if __name__ == "__main__":
    nin, nout, ks, st, pad = 8, 11, 3, 2, 1
    N, H, W = 2, 16, 16
    eps = 1e-5

    key = jax.random.PRNGKey(0)
    k_x, k_w, k_b, k_g, k_bt, k_m, k_v = jax.random.split(key, 7)

    x = jax.random.normal(k_x, (N, nin, H, W), dtype=jnp.float32)
    # deterministic parameters (shapes per nn.Conv2d(8, 11, 3) / BatchNorm2d(11))
    weight = jax.random.normal(k_w, (nout, nin, ks, ks), dtype=jnp.float32) * 0.1
    bias = jax.random.normal(k_b, (nout,), dtype=jnp.float32) * 0.1
    gamma = 1.0 + 0.1 * jax.random.normal(k_g, (nout,), dtype=jnp.float32)
    beta = 0.1 * jax.random.normal(k_bt, (nout,), dtype=jnp.float32)
    running_mean = 0.1 * jax.random.normal(k_m, (nout,), dtype=jnp.float32)
    running_var = jax.random.uniform(k_v, (nout,), dtype=jnp.float32,
                                     minval=0.5, maxval=1.5)

    out = conv2d_bn_relu(x, weight, bias, gamma, beta, running_mean, running_var,
                         stride=st, padding=pad, eps=eps)
    out = jax.block_until_ready(out)

    # pure-JAX f32 reference (conv + eval-mode BN + ReLU); the kernel uses bf16
    # MXU operands with f32 accumulation, so compare with a bf16-level tolerance.
    ref = jax.lax.conv_general_dilated(
        x, weight, window_strides=(st, st), padding=((pad, pad), (pad, pad)),
        dimension_numbers=("NCHW", "OIHW", "NCHW"))
    ref = ref + bias[None, :, None, None]
    ref = (gamma[None, :, None, None]
           * (ref - running_mean[None, :, None, None])
           / jnp.sqrt(running_var + eps)[None, :, None, None]
           + beta[None, :, None, None])
    ref = jnp.maximum(ref, 0.0)

    assert out.shape == (N, nout, H // st, W // st), out.shape
    assert jnp.allclose(out, ref, atol=5e-2, rtol=5e-2), "mismatch vs reference"
    print("KERNEL_OK")
</pallas_src>

<mosaic_0001>
module attributes {stable_mosaic.version = 11 : i64} {
  func.func @_conv_bn_relu_kernel(%arg0: i32, %arg1: memref<16x128xbf16, #tpu.memory_space<vmem>>, %arg2: memref<128x128xbf16, #tpu.memory_space<vmem>>, %arg3: memref<16x1xf32, #tpu.memory_space<vmem>>, %arg4: memref<16x128xf32, #tpu.memory_space<vmem>>) attributes {dimension_semantics = [#tpu.dimension_semantics<parallel>], iteration_bounds = array<i64: 1>, scalar_prefetch = 0 : i64, scratch_operands = 0 : i64, tpu.core_type = #tpu.core_type<tc>, window_params = [{pipeline_mode = #tpu.pipeline_mode<synchronous>, transform_indices = @transform_0, window_bounds = array<i64: 16, 128>}, {transform_indices = @transform_1, window_bounds = array<i64: 128, 128>}, {pipeline_mode = #tpu.pipeline_mode<synchronous>, transform_indices = @transform_2, window_bounds = array<i64: 16, 1>}, {transform_indices = @transform_3, window_bounds = array<i64: 16, 128>}]} {
    %c0 = arith.constant 0 : index
    %c0_0 = arith.constant 0 : index
    %0 = vector.load %arg1[%c0, %c0_0] : memref<16x128xbf16, #tpu.memory_space<vmem>>, vector<16x128xbf16>
    %c0_1 = arith.constant 0 : index
    %c0_2 = arith.constant 0 : index
    %1 = vector.load %arg2[%c0_1, %c0_2] : memref<128x128xbf16, #tpu.memory_space<vmem>>, vector<128x128xbf16>
    %cst = arith.constant dense<0.000000e+00> : vector<16x128xf32>
    %2 = tpu.matmul %0, %1, %cst {dimension_numbers = #tpu.dot_dimension_numbers<[1], [0], [0], [1], [0, 0, 1, 1], [], []>} : vector<16x128xbf16>, vector<128x128xbf16>, vector<16x128xf32> -> vector<16x128xf32>
    %c0_3 = arith.constant 0 : index
    %c0_4 = arith.constant 0 : index
    %3 = vector.load %arg3[%c0_3, %c0_4] : memref<16x1xf32, #tpu.memory_space<vmem>>, vector<16x1xf32>
    %4 = vector.broadcast %3 : vector<16x1xf32> to vector<16x128xf32>
    %5 = arith.addf %2, %4 : vector<16x128xf32>
    %cst_5 = arith.constant 0.000000e+00 : f32
    %6 = vector.broadcast %cst_5 : f32 to vector<16x128xf32>
    %7 = arith.maximumf %5, %6 : vector<16x128xf32>
    %c0_6 = arith.constant 0 : index
    %c0_7 = arith.constant 0 : index
    %8 = vector.load %arg4[%c0_6, %c0_7] : memref<16x128xf32, #tpu.memory_space<vmem>>, vector<16x128xf32>
    tpu.vector_store %arg4[%c0_6, %c0_7], %7 {strides = array<i32>} : memref<16x128xf32, #tpu.memory_space<vmem>>, vector<16x128xf32>,
    return
  }
  func.func @transform_0(%arg0: i32) -> (i32, i32) {
    %c0_i32 = arith.constant 0 : i32
    %c0_i32_0 = arith.constant 0 : i32
    %c0_i32_1 = arith.constant 0 : i32
    return %c0_i32, %c0_i32_0 : i32, i32
  }
  func.func @transform_1(%arg0: i32) -> (i32, i32) {
    %c0_i32 = arith.constant 0 : i32
    %c0_i32_0 = arith.constant 0 : i32
    return %c0_i32, %arg0 : i32, i32
  }
  func.func @transform_2(%arg0: i32) -> (i32, i32) {
    %c0_i32 = arith.constant 0 : i32
    %c0_i32_0 = arith.constant 0 : i32
    %c0_i32_1 = arith.constant 0 : i32
    return %c0_i32, %c0_i32_0 : i32, i32
  }
  func.func @transform_3(%arg0: i32) -> (i32, i32) {
    %c0_i32 = arith.constant 0 : i32
    %c0_i32_0 = arith.constant 0 : i32
    return %c0_i32, %arg0 : i32, i32
  }
}

</mosaic_0001>

<llo_original>
// kernel: tpu_custom_call.1
$region0: #{tpu_custom_call.1}
  #allocation0 [shape = 'u32[]', space=smem, size = 0x4, offset = 0x4, fixed_abs, tag = 'smem constant byte address 0x4 - core index']
  #allocation1 [shape = 'u32[144,128]{1,0:T(1,128)}', space=vmem, size = 0x12000, scoped, tag = 'internal scratch']
  %s0 = inlined_call_operand.vmem [shape: bf16[16,128], index: 0, kind: input, shape index: {}]
  %s1 = inlined_call_operand.hbm [shape: bf16[128,128], index: 1, kind: input, shape index: {}]
  %s2 = inlined_call_operand.vmem [shape: f32[16,1], index: 2, kind: input, shape index: {}]
  %s3 = inlined_call_operand.hbm [shape: f32[16,128], index: 3, kind: output, shape index: {}]
  %s4 = sld [smem:[#allocation0]]
  $region26: #{tpu_custom_call.1} parent=0
    _
  %s6 = ssub.s32 1, %s4
  %s7 = scalar_select 0, %s6, %s4
  $region1: #{tpu_custom_call.1} parent=0
    #allocation2 [shape = 'u8[32768]{0}', space=vmem, size = 0x8000, scoped, tag = 'input window, operand 1, single buffered']
    #allocation3 [shape = 's32[1]{0}', space=sflag, size = 0x4, scoped, tag = 'scoped memory for tpu_custom_call.1']
    #allocation4 [shape = 's32[1]{0}', space=sflag, size = 0x4, scoped, tag = 'scoped memory for tpu_custom_call.1']
    #allocation5 [shape = 'u8[8192]{0}', space=vmem, size = 0x2000, scoped, tag = 'output window, operand 0, single buffered']
    %8 = vsyncpa [#allocation3], 0
    %9 = vsyncpa [#allocation4], 0
    // Predicated region
    $region2: #{tpu_custom_call.1} parent=1 // pred_check
      _
    $region3: #{tpu_custom_call.1} parent=1 // pred_check_branch
      %11 = sbr.rel (0) target = $region5
    $region4: #{tpu_custom_call.1} parent=1 // pred_region
      _
    $region5: #{tpu_custom_call.1} parent=1 // pred_fallthru
      _
    // Predicated region
    $region6: #{tpu_custom_call.1} parent=1 // pred_check
      _
    $region7: #{tpu_custom_call.1} parent=1 // pred_check_branch
      %13 = sbr.rel (0) target = $region9
    $region8: #{tpu_custom_call.1} parent=1 // pred_region
      %s15 = ssub.s32 1024, 1024
      %16 = vsyncadd [#allocation3], %s15
      %s17 = sshll.u32 [#allocation2], 4
      %s18 = int_to_ptr.vmem [resolvable:$true] %s17
      %23 = dma.hbm_to_vmem [thread:$0]  %s1, 1024, %s18, [#allocation3], 64, 64, 4
    $region9: #{tpu_custom_call.1} parent=1 // pred_fallthru
      _
    // Predicated region
    $region10: #{tpu_custom_call.1} parent=1 // pred_check
      _
    $region11: #{tpu_custom_call.1} parent=1 // pred_check_branch
      %25 = sbr.rel (0) target = $region13
    $region12: #{tpu_custom_call.1} parent=1 // pred_region
      _
    $region13: #{tpu_custom_call.1} parent=1 // pred_fallthru
      _
    // Predicated region
    $region14: #{tpu_custom_call.1} parent=1 // pred_check
      _
    $region15: #{tpu_custom_call.1} parent=1 // pred_check_branch
      %27 = sbr.rel (0) target = $region17
    $region16: #{tpu_custom_call.1} parent=1 // pred_region
      %28 = dma.done [#allocation3], 1024
    $region17: #{tpu_custom_call.1} parent=1 // pred_fallthru
      _
    %v30 = vld [vmem:[%s0] sm:$0xf]
    %v31 = vld [vmem:[%s0 + $0x4] sm:$0xf]
    %v32 = vld [vmem:[#allocation2] sm:$0xf]
    %v33 = vld [vmem:[#allocation2 + $0x4] sm:$0xf]
    %v34 = vld [vmem:[#allocation2 + $0x8] sm:$0xf]
    %v35 = vld [vmem:[#allocation2 + $0xc] sm:$0xf]
    %v36 = vld [vmem:[#allocation2 + $0x10] sm:$0xf]
    %v37 = vld [vmem:[#allocation2 + $0x14] sm:$0xf]
    %v38 = vld [vmem:[#allocation2 + $0x18] sm:$0xf]
    %v39 = vld [vmem:[#allocation2 + $0x1c] sm:$0xf]
    %v40 = vld [vmem:[#allocation2 + $0x20] sm:$0xf]
    %v41 = vld [vmem:[#allocation2 + $0x24] sm:$0xf]
    %v42 = vld [vmem:[#allocation2 + $0x28] sm:$0xf]
    %v43 = vld [vmem:[#allocation2 + $0x2c] sm:$0xf]
    %v44 = vld [vmem:[#allocation2 + $0x30] sm:$0xf]
    %v45 = vld [vmem:[#allocation2 + $0x34] sm:$0xf]
    %v46 = vld [vmem:[#allocation2 + $0x38] sm:$0xf]
    %v47 = vld [vmem:[#allocation2 + $0x3c] sm:$0xf]
    %v48 = vld [vmem:[%s2] sm:$0xff]
    %v49 = vld [vmem:[%s2 + $0x8] sm:$0xff]
    %51 = vset.pattern.permute.xlu0 0
    %52 = vperm.xlu0 %51, %v48
    %v53 = vpop.permute.xlu0 %52
    %56 = vset.pattern.permute.xlu0 0
    %57 = vperm.xlu0 %56, %v49
    %v58 = vpop.permute.xlu0 %57
    %v62 = vunpack.c.l.b16 %v30
    %v63 = vunpack.c.l.b16 %v31
    %v64 = vpack.c.b16 %v63, %v62
    %v82 = vunpack.c.l.b16 %v32
    %v83 = vunpack.c.l.b16 %v33
    %v84 = vunpack.c.l.b16 %v34
    %v85 = vunpack.c.l.b16 %v35
    %v86 = vunpack.c.l.b16 %v36
    %v87 = vunpack.c.l.b16 %v37
    %v88 = vunpack.c.l.b16 %v38
    %v89 = vunpack.c.l.b16 %v39
    %v90 = vunpack.c.l.b16 %v40
    %v91 = vunpack.c.l.b16 %v41
    %v92 = vunpack.c.l.b16 %v42
    %v93 = vunpack.c.l.b16 %v43
    %v94 = vunpack.c.l.b16 %v44
    %v95 = vunpack.c.l.b16 %v45
    %v96 = vunpack.c.l.b16 %v46
    %v97 = vunpack.c.l.b16 %v47
    %v98 = vpack.c.b16 %v83, %v82
    %v99 = vpack.c.b16 %v85, %v84
    %v100 = vpack.c.b16 %v87, %v86
    %v101 = vpack.c.b16 %v89, %v88
    %v102 = vpack.c.b16 %v91, %v90
    %v103 = vpack.c.b16 %v93, %v92
    %v104 = vpack.c.b16 %v95, %v94
    %v105 = vpack.c.b16 %v97, %v96
    %114 = vmatprep.subr.bf16.mxu0 0
    %115 = vmatpush1.bf16.msra.mxu0 %v98
    %116 = vmatprep.subr.bf16.mxu0 0
    %117 = vmatpush1.bf16.msra.mxu0 %v99
    %118 = vmatprep.subr.bf16.mxu0 0
    %119 = vmatpush1.bf16.msra.mxu0 %v100
    %120 = vmatprep.subr.bf16.mxu0 0
    %121 = vmatpush1.bf16.msra.mxu0 %v101
    %122 = vmatprep.subr.bf16.mxu0 0
    %123 = vmatpush1.bf16.msra.mxu0 %v102
    %124 = vmatprep.subr.bf16.mxu0 0
    %125 = vmatpush1.bf16.msra.mxu0 %v103
    %126 = vmatprep.subr.bf16.mxu0 0
    %127 = vmatpush1.bf16.msra.mxu0 %v104
    %128 = vmatprep.subr.bf16.mxu0 0
    %129 = vmatpush1.bf16.msra.mxu0 %v105
    %130 = vmatprep.subr.bf16.mxu0 0
    %131 = vmatpush1.bf16.msra.mxu0 0
    %132 = vmatprep.subr.bf16.mxu0 0
    %133 = vmatpush1.bf16.msra.mxu0 0
    %134 = vmatprep.subr.bf16.mxu0 0
    %135 = vmatpush1.bf16.msra.mxu0 0
    %136 = vmatprep.subr.bf16.mxu0 0
    %137 = vmatpush1.bf16.msra.mxu0 0
    %138 = vmatprep.subr.bf16.mxu0 0
    %139 = vmatpush1.bf16.msra.mxu0 0
    %140 = vmatprep.subr.bf16.mxu0 0
    %141 = vmatpush1.bf16.msra.mxu0 0
    %142 = vmatprep.subr.bf16.mxu0 0
    %143 = vmatpush1.bf16.msra.mxu0 0
    %144 = vmatprep.subr.bf16.mxu0 0
    %145 = vmatpush1.bf16.msra.mxu0 0
    %146 = vmatprep.mubr.bf16.mxu0 0
    %147 = vmatmul.mubr.bf16.gmra.mrb[0].mxu0 %v64
    %v148 = vpop.f32.mrb[0].mxu0
    %v149 = vadd.f32 %v53, %v148
    %v150 = vpop.f32.mrb[0].mxu0
    %v151 = vpop.f32.mrb[0].mxu0
    %v152 = vadd.f32 %v58, %v151
    %v153 = vpop.f32.mrb[0].mxu0
    %154 = vdwg.mxu0
    %v155 = vmax.f32 %v149, 0.0
    %v156 = vmax.f32 %v152, 0.0
    %157 = vst [vmem:[#allocation5] sm:$0xff] %v155
    %158 = vst [vmem:[#allocation5 + $0x8] sm:$0xff] %v156
    // Predicated region
    $region18: #{tpu_custom_call.1} parent=1 // pred_check
      _
    $region19: #{tpu_custom_call.1} parent=1 // pred_check_branch
      %160 = sbr.rel (0) target = $region21
    $region20: #{tpu_custom_call.1} parent=1 // pred_region
      %s162 = ssub.s32 256, 256
      %163 = vsyncadd [#allocation4], %s162
      %s164 = sshll.u32 [#allocation5], 4
      %s165 = int_to_ptr.vmem [resolvable:$true] %s164
      %170 = dma.vmem_to_hbm [thread:$0]  %s165, 256, %s3, [#allocation4], 128, 128, 8
    $region21: #{tpu_custom_call.1} parent=1 // pred_fallthru
      _
    // Predicated region
    $region22: #{tpu_custom_call.1} parent=1 // pred_check
      _
    $region23: #{tpu_custom_call.1} parent=1 // pred_check_branch
      %172 = sbr.rel (0) target = $region25
    $region24: #{tpu_custom_call.1} parent=1 // pred_region
      %173 = dma.done [#allocation4], 256
    $region25: #{tpu_custom_call.1} parent=1 // pred_fallthru
      _
    %174 = vsyncpa [#allocation3], 1
    %175 = vsyncpa [#allocation4], 1

</llo_original>
